<compile_context>
chip_gen: v7x
topology: tpu7x:2x2x1
jax: 0.10.0
libtpu: 0.0.40
codegen_flags: <defaults>
</compile_context>

<pallas_src>
import jax
import jax.numpy as jnp
import numpy as np
from jax import lax
from jax.experimental import pallas as pl
from jax.experimental.pallas import tpu as pltpu

# ---------------- problem sizes (small, consistent with the module) ----------------
N, C_IN, C_OUT = 2, 4, 8
H, W = 16, 16
KH, KW = 3, 3
PAD = 1                          # kernel_size // 2

M = N * H * W                    # 512 output pixels -> lane axis (4 x 128)
K_RAW = KH * KW * C_IN           # 36 im2col contraction
K_HALF = 40                      # 36 + 1 (folded-bias ones row) + 3 zero rows
K_TOT = 2 * K_HALF               # 80 = [relu(im2col) ; im2col], multiple of 16 (bf16 tiles)


# ------------------------------- Pallas kernel --------------------------------------
def residual_block_kernel(rhs_ref, w_ref, alpha_ref, out_ref):
    # rhs_ref  : (K_TOT, M)   bf16. rows 0:40  = relu(im2col(x)) (+ones/zero rows)
    #                               rows 40:80 = im2col(x)       (+ones/zero rows)
    # w_ref    : (2*C_OUT, K_TOT) bf16 block-diag [[w1|b1, 0], [0, wx|bx]]
    # alpha_ref: (1, 1)       f32 SMEM re-zero scalar
    # out_ref  : (C_OUT, M)   f32 lane-dense result
    res = jnp.dot(w_ref[...], rhs_ref[...],
                  preferred_element_type=jnp.float32)          # (16, M) f32, single MXU pass
    branch = res[0:C_OUT, :]                                   # conv1(relu(x)) + b1
    linear = res[C_OUT:2 * C_OUT, :]                           # x_linear(x)    + bx
    # elementwise kept in f32 (v5e VPU has no bf16); out_norm = Identity
    out_ref[...] = alpha_ref[0, 0] * jnp.maximum(branch, 0.0) + linear


# ------------------------------ wrapper ----------------------------------------------
def _im2col_T(x_nhwc):
    """(N,H,W,C_IN) -> (K_HALF, M) transposed im2col slab with ones row + zero alignment rows."""
    x_pad = jnp.pad(x_nhwc, ((0, 0), (PAD, PAD), (PAD, PAD), (0, 0)))
    patches = [x_pad[:, kh:kh + H, kw:kw + W, :] for kh in range(KH) for kw in range(KW)]
    slab = jnp.stack(patches, axis=3)                          # (N, H, W, 9, C_IN)
    slab = slab.reshape(M, K_RAW).T                            # (36, M) tap-major, then C_IN
    ones = jnp.ones((1, M), slab.dtype)                        # folded-bias row
    zpad = jnp.zeros((K_HALF - K_RAW - 1, M), slab.dtype)      # alignment rows
    return jnp.concatenate([slab, ones, zpad], axis=0)         # (40, M)


def _fold_bias(w_hwio, b):
    """HWIO (KH,KW,C_IN,C_OUT) + (C_OUT,) -> (C_OUT, K_HALF), bias in column K_RAW."""
    w_mat = w_hwio.reshape(K_RAW, C_OUT).T                     # (C_OUT, 36), matches slab rows
    zpad = jnp.zeros((C_OUT, K_HALF - K_RAW - 1), w_mat.dtype)
    return jnp.concatenate([w_mat, b.reshape(C_OUT, 1), zpad], axis=1)   # (C_OUT, 40)


@jax.jit
def residual_block(x_nchw, w1, b1, wx, bx, alpha):
    """x_nchw: (N, C_IN, H, W) float32. Returns (N, C_OUT, H, W) float32."""
    x_nhwc = jnp.transpose(x_nchw, (0, 2, 3, 1)).astype(jnp.float32)

    # RHS: [relu(im2col(x)) ; im2col(x)] -- relu fuses with the im2col gather under jit.
    slab = _im2col_T(x_nhwc)                                               # (40, M) f32
    rhs = jnp.concatenate([jnp.maximum(slab, 0.0), slab], axis=0)          # (80, M)
    rhs = rhs.astype(jnp.bfloat16)                                         # bf16 MXU operand

    # Block-diagonal LHS: one matmul computes both conv branches.
    w1_aug = _fold_bias(w1, b1)                                            # (8, 40)
    wx_aug = _fold_bias(wx, bx)                                            # (8, 40)
    z = jnp.zeros((C_OUT, K_HALF), jnp.float32)
    w_blk = jnp.concatenate(
        [jnp.concatenate([w1_aug, z], axis=1),
         jnp.concatenate([z, wx_aug], axis=1)], axis=0).astype(jnp.bfloat16)  # (16, 80)

    alpha_2d = jnp.asarray(alpha, jnp.float32).reshape(1, 1)

    out_t = pl.pallas_call(
        residual_block_kernel,
        out_shape=jax.ShapeDtypeStruct((C_OUT, M), jnp.float32),
        in_specs=[
            pl.BlockSpec(memory_space=pltpu.MemorySpace.VMEM),   # rhs slab (bf16, ~80 KB)
            pl.BlockSpec(memory_space=pltpu.MemorySpace.VMEM),   # block-diag weights (bf16)
            pl.BlockSpec(memory_space=pltpu.MemorySpace.SMEM),   # alpha scalar
        ],
        out_specs=pl.BlockSpec(memory_space=pltpu.MemorySpace.VMEM),
    )(rhs, w_blk, alpha_2d)

    # lane-dense (C_OUT, N*H*W) -> NCHW; pure layout plumbing, fused by XLA under jit
    return jnp.transpose(out_t.reshape(C_OUT, N, H, W), (1, 0, 2, 3))


# ------------------------------ pure-JAX reference ----------------------------------
def residual_block_ref(x_nchw, w1, b1, wx, bx, alpha):
    dn = ("NCHW", "HWIO", "NCHW")
    out = jnp.maximum(x_nchw, 0.0)
    out = lax.conv_general_dilated(out, w1, (1, 1), "SAME", dimension_numbers=dn)
    out = jnp.maximum(out + b1[None, :, None, None], 0.0)
    out_linear = lax.conv_general_dilated(x_nchw, wx, (1, 1), "SAME", dimension_numbers=dn)
    out_linear = out_linear + bx[None, :, None, None]
    return alpha * out + out_linear


# ---------------------------------- driver -------------------------------------------
if __name__ == "__main__":
    key = jax.random.PRNGKey(0)
    kx, kw1, kb1, kwx, kbx = jax.random.split(key, 5)

    # deterministic synthetic parameters (shapes match the PyTorch module's __init__)
    fan_in = C_IN * KH * KW
    bound = 1.0 / np.sqrt(fan_in)
    x = jax.random.normal(kx, (N, C_IN, H, W), jnp.float32)            # NCHW, like the module
    w1 = jax.random.uniform(kw1, (KH, KW, C_IN, C_OUT), jnp.float32, -bound, bound)
    b1 = jax.random.uniform(kb1, (C_OUT,), jnp.float32, -bound, bound)
    wx = jax.random.uniform(kwx, (KH, KW, C_IN, C_OUT), jnp.float32, -bound, bound)
    bx = jax.random.uniform(kbx, (C_OUT,), jnp.float32, -bound, bound)
    alpha = jnp.float32(0.0)   # re-zero init, exactly as the PyTorch module (nn.Parameter(0.0))

    # bf16 MXU operands -> tolerance relaxed per review (f32 accumulation keeps it tight-ish)
    TOL = dict(atol=2e-2, rtol=2e-2)

    y = jax.block_until_ready(residual_block(x, w1, b1, wx, bx, alpha))
    y_ref = residual_block_ref(x, w1, b1, wx, bx, alpha)
    np.testing.assert_allclose(np.asarray(y), np.asarray(y_ref), **TOL)

    # also exercise the residual branch numerically with a nonzero alpha (same compiled fn)
    y2 = jax.block_until_ready(residual_block(x, w1, b1, wx, bx, jnp.float32(0.7)))
    y2_ref = residual_block_ref(x, w1, b1, wx, bx, jnp.float32(0.7))
    np.testing.assert_allclose(np.asarray(y2), np.asarray(y2_ref), **TOL)

    print("KERNEL_OK")
</pallas_src>

<mosaic_0001>
module attributes {stable_mosaic.version = 11 : i64} {
  func.func @residual_block_kernel(%arg0: memref<80x512xbf16, #tpu.memory_space<vmem>>, %arg1: memref<16x80xbf16, #tpu.memory_space<vmem>>, %arg2: memref<1x1xf32, #tpu.memory_space<smem>>, %arg3: memref<8x512xf32, #tpu.memory_space<vmem>>) attributes {dimension_semantics = [], scalar_prefetch = 0 : i64, scratch_operands = 0 : i64, tpu.core_type = #tpu.core_type<tc>} {
    %c0 = arith.constant 0 : index
    %c0_0 = arith.constant 0 : index
    %0 = vector.load %arg1[%c0, %c0_0] : memref<16x80xbf16, #tpu.memory_space<vmem>>, vector<16x80xbf16>
    %c0_1 = arith.constant 0 : index
    %c0_2 = arith.constant 0 : index
    %1 = vector.load %arg0[%c0_1, %c0_2] : memref<80x512xbf16, #tpu.memory_space<vmem>>, vector<80x512xbf16>
    %cst = arith.constant dense<0.000000e+00> : vector<16x512xf32>
    %2 = tpu.matmul %0, %1, %cst {dimension_numbers = #tpu.dot_dimension_numbers<[1], [0], [0], [1], [0, 0, 1, 1], [], []>} : vector<16x80xbf16>, vector<80x512xbf16>, vector<16x512xf32> -> vector<16x512xf32>
    %3 = vector.extract_strided_slice %2 {offsets = [0, 0], sizes = [8, 512], strides = [1, 1]} : vector<16x512xf32> to vector<8x512xf32>
    %4 = vector.extract_strided_slice %2 {offsets = [8, 0], sizes = [8, 512], strides = [1, 1]} : vector<16x512xf32> to vector<8x512xf32>
    %c0_3 = arith.constant 0 : index
    %c0_4 = arith.constant 0 : index
    %5 = memref.load %arg2[%c0_3, %c0_4] : memref<1x1xf32, #tpu.memory_space<smem>>
    %cst_5 = arith.constant 0.000000e+00 : f32
    %6 = vector.broadcast %cst_5 : f32 to vector<8x512xf32>
    %7 = arith.maximumf %3, %6 : vector<8x512xf32>
    %8 = vector.broadcast %5 : f32 to vector<8x512xf32>
    %9 = arith.mulf %8, %7 : vector<8x512xf32>
    %10 = arith.addf %9, %4 : vector<8x512xf32>
    %c0_6 = arith.constant 0 : index
    %c0_7 = arith.constant 0 : index
    %11 = vector.load %arg3[%c0_6, %c0_7] : memref<8x512xf32, #tpu.memory_space<vmem>>, vector<8x512xf32>
    tpu.vector_store %arg3[%c0_6, %c0_7], %10 {strides = array<i32>} : memref<8x512xf32, #tpu.memory_space<vmem>>, vector<8x512xf32>,
    return
  }
}

</mosaic_0001>

<llo_original>
// kernel: residual_block.1
$region0: #{residual_block.1}
  #allocation0 [shape = 'u32[]', space=smem, size = 0x4, offset = 0x4, fixed_abs, tag = 'smem constant byte address 0x4 - core index']
  #allocation1 [shape = 'u32[144,128]{1,0:T(1,128)}', space=vmem, size = 0x12000, scoped, tag = 'internal scratch']
  #allocation2 [shape = 'f32[1,1]{1,0:T(1,128)S(6)}', space=smem, size = 0x200, scoped, tag = 'scoped memory for residual_block.1']
  %s0 = inlined_call_operand.vmem [shape: bf16[80,512], index: 0, kind: input, shape index: {}]
  %s1 = inlined_call_operand.vmem [shape: bf16[16,80], index: 1, kind: input, shape index: {}]
  %s2 = inlined_call_operand.<no memory space> [shape: f32[1,1], index: 2, kind: input, shape index: {}]
  %s3 = inlined_call_operand.vmem [shape: f32[8,512], index: 3, kind: output, shape index: {}]
  %s4 = sld [smem:[#allocation0]]
  $region22: #{residual_block.1} parent=0
    _
  %s6 = ssub.s32 1, %s4
  %s7 = scalar_select 0, %s6, %s4
  %8 = sst [smem:[#allocation2]] %s2
  // Predicated region
  $region2: #{residual_block.1} parent=0 // pred_check
    _
  $region3: #{residual_block.1} parent=0 // pred_check_branch
    %10 = sbr.rel (0) target = $region5
  $region4: #{residual_block.1} parent=0 // pred_region
    _
  $region5: #{residual_block.1} parent=0 // pred_fallthru
    _
  // Predicated region
  $region6: #{residual_block.1} parent=0 // pred_check
    _
  $region7: #{residual_block.1} parent=0 // pred_check_branch
    %12 = sbr.rel (0) target = $region9
  $region8: #{residual_block.1} parent=0 // pred_region
    _
  $region9: #{residual_block.1} parent=0 // pred_fallthru
    _
  // Predicated region
  $region10: #{residual_block.1} parent=0 // pred_check
    _
  $region11: #{residual_block.1} parent=0 // pred_check_branch
    %14 = sbr.rel (0) target = $region13
  $region12: #{residual_block.1} parent=0 // pred_region
    _
  $region13: #{residual_block.1} parent=0 // pred_fallthru
    _
  %v16 = vld [vmem:[%s1] sm:$0xf]
  %v17 = vld [vmem:[%s1 + $0x4] sm:$0xf]
  %v18 = vld [vmem:[%s0] sm:$0xff]
  %v19 = vld [vmem:[%s0 + $0x8] sm:$0xff]
  %v20 = vld [vmem:[%s0 + $0x10] sm:$0xff]
  %v21 = vld [vmem:[%s0 + $0x18] sm:$0xff]
  %v22 = vld [vmem:[%s0 + $0x20] sm:$0xff]
  %v23 = vld [vmem:[%s0 + $0x28] sm:$0xff]
  %v24 = vld [vmem:[%s0 + $0x30] sm:$0xff]
  %v25 = vld [vmem:[%s0 + $0x38] sm:$0xff]
  %v26 = vld [vmem:[%s0 + $0x40] sm:$0xff]
  %v27 = vld [vmem:[%s0 + $0x48] sm:$0xff]
  %v28 = vld [vmem:[%s0 + $0x50] sm:$0xff]
  %v29 = vld [vmem:[%s0 + $0x58] sm:$0xff]
  %v30 = vld [vmem:[%s0 + $0x60] sm:$0xff]
  %v31 = vld [vmem:[%s0 + $0x68] sm:$0xff]
  %v32 = vld [vmem:[%s0 + $0x70] sm:$0xff]
  %v33 = vld [vmem:[%s0 + $0x78] sm:$0xff]
  %v34 = vld [vmem:[%s0 + $0x80] sm:$0xff]
  %v35 = vld [vmem:[%s0 + $0x88] sm:$0xff]
  %v36 = vld [vmem:[%s0 + $0x90] sm:$0xff]
  %v37 = vld [vmem:[%s0 + $0x98] sm:$0xff]
  %v40 = vunpack.c.l.b16 %v16
  %v41 = vunpack.c.l.b16 %v17
  %v42 = vpack.c.b16 %v41, %v40
  %v63 = vunpack.c.l.b16 %v18
  %v64 = vunpack.c.h.b16 %v18
  %v65 = vunpack.c.l.b16 %v19
  %v66 = vunpack.c.h.b16 %v19
  %v67 = vunpack.c.l.b16 %v20
  %v68 = vunpack.c.h.b16 %v20
  %v69 = vunpack.c.l.b16 %v21
  %v70 = vunpack.c.h.b16 %v21
  %v71 = vunpack.c.l.b16 %v22
  %v72 = vunpack.c.h.b16 %v22
  %v73 = vunpack.c.l.b16 %v23
  %v74 = vunpack.c.h.b16 %v23
  %v75 = vunpack.c.l.b16 %v24
  %v76 = vunpack.c.h.b16 %v24
  %v77 = vunpack.c.l.b16 %v25
  %v78 = vunpack.c.h.b16 %v25
  %v79 = vunpack.c.l.b16 %v26
  %v80 = vunpack.c.h.b16 %v26
  %v81 = vunpack.c.l.b16 %v27
  %v82 = vunpack.c.h.b16 %v27
  %v83 = vunpack.c.l.b16 %v28
  %v84 = vunpack.c.h.b16 %v28
  %v85 = vunpack.c.l.b16 %v29
  %v86 = vunpack.c.h.b16 %v29
  %v87 = vunpack.c.l.b16 %v30
  %v88 = vunpack.c.h.b16 %v30
  %v89 = vunpack.c.l.b16 %v31
  %v90 = vunpack.c.h.b16 %v31
  %v91 = vunpack.c.l.b16 %v32
  %v92 = vunpack.c.h.b16 %v32
  %v93 = vunpack.c.l.b16 %v33
  %v94 = vunpack.c.h.b16 %v33
  %v95 = vunpack.c.l.b16 %v34
  %v96 = vunpack.c.h.b16 %v34
  %v97 = vunpack.c.l.b16 %v35
  %v98 = vunpack.c.h.b16 %v35
  %v99 = vunpack.c.l.b16 %v36
  %v100 = vunpack.c.h.b16 %v36
  %v101 = vunpack.c.l.b16 %v37
  %v102 = vunpack.c.h.b16 %v37
  %v103 = vpack.c.b16 %v67, %v63
  %v104 = vpack.c.b16 %v68, %v64
  %v105 = vpack.c.b16 %v69, %v65
  %v106 = vpack.c.b16 %v70, %v66
  %v107 = vpack.c.b16 %v75, %v71
  %v108 = vpack.c.b16 %v76, %v72
  %v109 = vpack.c.b16 %v77, %v73
  %v110 = vpack.c.b16 %v78, %v74
  %v111 = vpack.c.b16 %v83, %v79
  %v112 = vpack.c.b16 %v84, %v80
  %v113 = vpack.c.b16 %v85, %v81
  %v114 = vpack.c.b16 %v86, %v82
  %v115 = vpack.c.b16 %v91, %v87
  %v116 = vpack.c.b16 %v92, %v88
  %v117 = vpack.c.b16 %v93, %v89
  %v118 = vpack.c.b16 %v94, %v90
  %v119 = vpack.c.b16 %v99, %v95
  %v120 = vpack.c.b16 %v100, %v96
  %v121 = vpack.c.b16 %v101, %v97
  %v122 = vpack.c.b16 %v102, %v98
  %vm143 = vcmask 654336
  %v145 = vsel %vm143, %v42, 0
  %147 = vmatprep.subr.bf16.mxu0 %v104
  %148 = vmatpush1.bf16.msra.mxu0 %v103
  %149 = vmatprep.subr.bf16.mxu0 %v108
  %150 = vmatpush1.bf16.msra.mxu0 %v107
  %151 = vmatprep.subr.bf16.mxu0 %v112
  %152 = vmatpush1.bf16.msra.mxu0 %v111
  %153 = vmatprep.subr.bf16.mxu0 %v116
  %154 = vmatpush1.bf16.msra.mxu0 %v115
  %155 = vmatprep.subr.bf16.mxu0 %v120
  %156 = vmatpush1.bf16.msra.mxu0 %v119
  %157 = vmatprep.subr.bf16.mxu0 0
  %158 = vmatpush1.bf16.msra.mxu0 0
  %159 = vmatprep.subr.bf16.mxu0 0
  %160 = vmatpush1.bf16.msra.mxu0 0
  %161 = vmatprep.subr.bf16.mxu0 0
  %162 = vmatpush1.bf16.msra.mxu0 0
  %163 = vmatprep.subr.bf16.mxu0 0
  %164 = vmatpush1.bf16.msra.mxu0 0
  %165 = vmatprep.subr.bf16.mxu0 0
  %166 = vmatpush1.bf16.msra.mxu0 0
  %167 = vmatprep.subr.bf16.mxu0 0
  %168 = vmatpush1.bf16.msra.mxu0 0
  %169 = vmatprep.subr.bf16.mxu0 0
  %170 = vmatpush1.bf16.msra.mxu0 0
  %171 = vmatprep.subr.bf16.mxu0 0
  %172 = vmatpush1.bf16.msra.mxu0 0
  %173 = vmatprep.subr.bf16.mxu0 0
  %174 = vmatpush1.bf16.msra.mxu0 0
  %175 = vmatprep.subr.bf16.mxu0 0
  %176 = vmatpush1.bf16.msra.mxu0 0
  %177 = vmatprep.subr.bf16.mxu0 0
  %178 = vmatpush1.bf16.msra.mxu0 0
  %179 = vmatprep.mubr.bf16.mxu0 0
  %180 = vmatmul.mubr.bf16.gmra.mrb[0].mxu0 %v145
  %v181 = vpop.f32.mrb[0].mxu0
  %v182 = vadd.f32 0.0, %v181
  %v183 = vpop.f32.mrb[0].mxu0
  %v184 = vadd.f32 0.0, %v183
  %v185 = vpop.f32.mrb[0].mxu0
  %v186 = vadd.f32 0.0, %v185
  %v187 = vpop.f32.mrb[0].mxu0
  %v188 = vadd.f32 0.0, %v187
  %189 = vdwg.mxu0
  %190 = vmatprep.subr.bf16.mxu0 %v106
  %191 = vmatpush1.bf16.msra.mxu0 %v105
  %192 = vmatprep.subr.bf16.mxu0 %v110
  %193 = vmatpush1.bf16.msra.mxu0 %v109
  %194 = vmatprep.subr.bf16.mxu0 %v114
  %195 = vmatpush1.bf16.msra.mxu0 %v113
  %196 = vmatprep.subr.bf16.mxu0 %v118
  %197 = vmatpush1.bf16.msra.mxu0 %v117
  %198 = vmatprep.subr.bf16.mxu0 %v122
  %199 = vmatpush1.bf16.msra.mxu0 %v121
  %200 = vmatprep.subr.bf16.mxu0 0
  %201 = vmatpush1.bf16.msra.mxu0 0
  %202 = vmatprep.subr.bf16.mxu0 0
  %203 = vmatpush1.bf16.msra.mxu0 0
  %204 = vmatprep.subr.bf16.mxu0 0
  %205 = vmatpush1.bf16.msra.mxu0 0
  %206 = vmatprep.subr.bf16.mxu0 0
  %207 = vmatpush1.bf16.msra.mxu0 0
  %208 = vmatprep.subr.bf16.mxu0 0
  %209 = vmatpush1.bf16.msra.mxu0 0
  %210 = vmatprep.subr.bf16.mxu0 0
  %211 = vmatpush1.bf16.msra.mxu0 0
  %212 = vmatprep.subr.bf16.mxu0 0
  %213 = vmatpush1.bf16.msra.mxu0 0
  %214 = vmatprep.subr.bf16.mxu0 0
  %215 = vmatpush1.bf16.msra.mxu0 0
  %216 = vmatprep.subr.bf16.mxu0 0
  %217 = vmatpush1.bf16.msra.mxu0 0
  %218 = vmatprep.subr.bf16.mxu0 0
  %219 = vmatpush1.bf16.msra.mxu0 0
  %220 = vmatprep.subr.bf16.mxu0 0
  %221 = vmatpush1.bf16.msra.mxu0 0
  %222 = vmatprep.mubr.bf16.mxu0 0
  %223 = vmatmul.mubr.bf16.gmra.mrb[0].mxu0 %v145
  %v224 = vpop.f32.mrb[0].mxu0
  %v225 = vadd.f32 0.0, %v224
  %v226 = vpop.f32.mrb[0].mxu0
  %v227 = vadd.f32 0.0, %v226
  %v228 = vpop.f32.mrb[0].mxu0
  %v229 = vadd.f32 0.0, %v228
  %v230 = vpop.f32.mrb[0].mxu0
  %v231 = vadd.f32 0.0, %v230
  %232 = vdwg.mxu0
  %s233 = sld [smem:[#allocation2]]
  %v234 = vmax.f32 %v182, 0.0
  %v235 = vmax.f32 %v184, 0.0
  %v236 = vmax.f32 %v225, 0.0
  %v237 = vmax.f32 %v227, 0.0
  %v238 = vstv %s233
  %v239 = vmul.f32 %v238, %v234
  %v240 = vmul.f32 %v238, %v235
  %v241 = vmul.f32 %v238, %v236
  %v242 = vmul.f32 %v238, %v237
  %v243 = vadd.f32 %v239, %v186
  %v244 = vadd.f32 %v240, %v188
  %v245 = vadd.f32 %v241, %v229
  %v246 = vadd.f32 %v242, %v231
  %247 = vst [vmem:[%s3] sm:$0xff] %v243
  %248 = vst [vmem:[%s3 + $0x8] sm:$0xff] %v244
  %249 = vst [vmem:[%s3 + $0x10] sm:$0xff] %v245
  %250 = vst [vmem:[%s3 + $0x18] sm:$0xff] %v246
  // Predicated region
  $region14: #{residual_block.1} parent=0 // pred_check
    _
  $region15: #{residual_block.1} parent=0 // pred_check_branch
    %252 = sbr.rel (0) target = $region17
  $region16: #{residual_block.1} parent=0 // pred_region
    _
  $region17: #{residual_block.1} parent=0 // pred_fallthru
    _
  // Predicated region
  $region18: #{residual_block.1} parent=0 // pred_check
    _
  $region19: #{residual_block.1} parent=0 // pred_check_branch
    %254 = sbr.rel (0) target = $region21
  $region20: #{residual_block.1} parent=0 // pred_region
    _
  $region21: #{residual_block.1} parent=0 // pred_fallthru
    _

</llo_original>
